<compile_context>
chip_gen: v6e
topology: v6e:2x2x1
jax: 0.10.0
libtpu: 0.0.40
codegen_flags: <defaults>
</compile_context>

<pallas_src>
import jax
import jax.numpy as jnp
from jax.experimental import pallas as pl
from jax.experimental.pallas import tpu as pltpu


def _round_up(n, m):
    return (n + m - 1) // m * m


# ----------------------------------------------------------------------------
# Fused kernel: encoder stub  ->  decoder 1x1 conv  ->  masked-L1 partial
# ----------------------------------------------------------------------------
def _simmim_fused_kernel(xp_ref, mask_ref, enc_w_ref, enc_b_ref, tok_ref,
                         dec_w_ref, dec_b_ref, num_ref):
    # xp   : [tm, P]    f32   flattened patches (embed input AND L1 target)
    # mask : [tm, 1]    f32   1.0 where the patch is masked
    # enc_w: [P, FPAD]  bf16, enc_b/tok: [1, FPAD] f32
    # dec_w: [FPAD, Co] bf16, dec_b: [1, Co] f32
    # num  : [1, 8, Co] f32   per-tile partial L1 sum (finished on host)
    xp = xp_ref[...]
    masked = mask_ref[...] > 0.0                       # [tm, 1] bool

    # --- encoder stub: patch embed + bias, then mask-token select
    z = jnp.dot(xp.astype(jnp.bfloat16), enc_w_ref[...],
                preferred_element_type=jnp.float32) + enc_b_ref[...]
    z = jnp.where(masked, tok_ref[...], z)             # [tm, FPAD] f32

    # --- decoder: 1x1 conv == per-token matmul + bias
    y = jnp.dot(z.astype(jnp.bfloat16), dec_w_ref[...],
                preferred_element_type=jnp.float32) + dec_b_ref[...]   # [tm, Co]

    # --- masked L1 (token layout == pixel layout up to permutation; padded
    #     token rows have mask==0 so they contribute nothing)
    diff = jnp.where(masked, jnp.abs(xp - y), 0.0)     # [tm, Co]

    # Reduce only down to one vreg-shaped [8, Co] partial: splitting the
    # sublane axis by 8 keeps the layout, so this is pure cross-vreg VPU adds.
    tm, co = diff.shape
    partial = jnp.sum(diff.reshape(tm // 8, 8, co), axis=0)
    num_ref[...] = partial[None]


# ----------------------------------------------------------------------------
# One-time (init-time) weight preparation: pad feature dim to 128, cast matmul
# weights to bf16.  Hoisted out of the per-call forward.
# ----------------------------------------------------------------------------
def prepare_params(params):
    P, F = params["enc_w"].shape
    Co = params["dec_w"].shape[1]
    FPAD = _round_up(F, 128)
    return {
        "enc_w": jnp.pad(params["enc_w"], ((0, 0), (0, FPAD - F))).astype(jnp.bfloat16),
        "enc_b": jnp.pad(params["enc_b"], ((0, 0), (0, FPAD - F))).astype(jnp.float32),
        "mask_token": jnp.pad(params["mask_token"],
                              ((0, 0), (0, FPAD - F))).astype(jnp.float32),
        "dec_w": jnp.pad(params["dec_w"], ((0, FPAD - F), (0, 0))).astype(jnp.bfloat16),
        "dec_b": params["dec_b"].astype(jnp.float32),
        "P": P, "F": F, "Co": Co, "FPAD": FPAD,
    }


# ----------------------------------------------------------------------------
# SimMIM forward (pretrain mode)
# ----------------------------------------------------------------------------
def simmim_pretrain_forward(x, mask, prepped, *, patch_size, encoder_stride,
                            tile_tokens=512):
    B, C, H, W = x.shape
    assert C == 3, "SimMIM decoder reconstructs 3 channels"
    assert encoder_stride == patch_size, (
        "fused token-layout loss requires encoder_stride == patch_size")
    Hp, Wp = H // patch_size, W // patch_size
    T = B * Hp * Wp
    P = C * patch_size * patch_size
    Co, FPAD = prepped["Co"], prepped["FPAD"]
    assert prepped["P"] == P and Co == P

    # --- token tiling: multiple of 8; force >=2 grid steps when possible so
    #     the "parallel" axis splits across both v7x TensorCores.
    tm = min(tile_tokens, _round_up(T, 8))
    if T > 8:
        tm = min(tm, _round_up((T + 1) // 2, 8))
    Tpad = _round_up(T, tm)
    G = Tpad // tm

    # --- patchify once -> token-major [T, P] (Conv2d(kernel=patch,stride=patch)
    #     channel-major ordering), reused as both embed input and loss target.
    # TODO(synk): in production, produce xp directly from the data pipeline
    # (or fold patchify into the encoder's patch-embed) instead of per call.
    xp = x.reshape(B, C, Hp, patch_size, Wp, patch_size)
    xp = xp.transpose(0, 2, 4, 1, 3, 5).reshape(T, P).astype(jnp.float32)
    xp = jnp.pad(xp, ((0, Tpad - T), (0, 0)))

    mflat = mask.reshape(T, 1).astype(jnp.float32)
    mflat = jnp.pad(mflat, ((0, Tpad - T), (0, 0)))

    # --- explicit VMEM budget: single-buffered weights + double-buffered
    #     token streams (mask block lane-pads to 128) + headroom.
    weights_vmem = (P * FPAD + FPAD * Co) * 2 + (2 * FPAD + Co) * 4
    stream_vmem = 2 * (tm * P * 4 + tm * 128 * 4)
    vmem_limit = int(max(16 << 20,
                         min(48 << 20, weights_vmem + stream_vmem + (8 << 20))))

    def const_spec(shape):
        return pl.BlockSpec(shape, lambda i: (0,) * len(shape),
                            pipeline_mode=pl.Buffered(1))

    num_parts = pl.pallas_call(
        _simmim_fused_kernel,
        out_shape=jax.ShapeDtypeStruct((G, 8, Co), jnp.float32),
        grid_spec=pltpu.PrefetchScalarGridSpec(
            num_scalar_prefetch=0,
            grid=(G,),
            in_specs=[
                pl.BlockSpec((tm, P), lambda i: (i, 0)),   # xp tile (unpadded P)
                pl.BlockSpec((tm, 1), lambda i: (i, 0)),   # mask tile
                const_spec((P, FPAD)),                     # enc_w (resident)
                const_spec((1, FPAD)),                     # enc_b
                const_spec((1, FPAD)),                     # mask_token
                const_spec((FPAD, Co)),                    # dec_w (resident)
                const_spec((1, Co)),                       # dec_b
            ],
            out_specs=pl.BlockSpec((1, 8, Co), lambda i: (i, 0, 0)),
        ),
        compiler_params=pltpu.CompilerParams(
            dimension_semantics=("parallel",),
            vmem_limit_bytes=vmem_limit,
        ),
    )(xp, mflat, prepped["enc_w"], prepped["enc_b"], prepped["mask_token"],
      prepped["dec_w"], prepped["dec_b"])

    num = num_parts.sum()
    den = mask.astype(jnp.float32).sum() * jnp.float32(patch_size * patch_size)
    return num / (den + 1e-5) / jnp.float32(C)


# ----------------------------------------------------------------------------
# Pure-JAX reference (mirrors the PyTorch module with the same encoder stub;
# weights rounded to bf16 to match the kernel's MXU inputs)
# ----------------------------------------------------------------------------
def _reference_loss(x, mask, params, *, patch_size, encoder_stride):
    B, C, H, W = x.shape
    Hp, Wp = H // patch_size, W // patch_size
    r = encoder_stride
    xp = x.reshape(B, C, Hp, patch_size, Wp, patch_size)
    xp = xp.transpose(0, 2, 4, 1, 3, 5).reshape(B * Hp * Wp,
                                                C * patch_size * patch_size)
    m = mask.reshape(B * Hp * Wp, 1).astype(jnp.float32)

    enc_w = params["enc_w"].astype(jnp.bfloat16).astype(jnp.float32)
    dec_w = params["dec_w"].astype(jnp.bfloat16).astype(jnp.float32)
    z = xp.astype(jnp.bfloat16).astype(jnp.float32) @ enc_w + params["enc_b"]
    z = z * (1.0 - m) + params["mask_token"] * m
    y = z.astype(jnp.bfloat16).astype(jnp.float32) @ dec_w + params["dec_b"]

    Co = 3
    y = y.reshape(B, Hp, Wp, Co, r, r)
    x_rec = y.transpose(0, 3, 1, 4, 2, 5).reshape(B, Co, Hp * r, Wp * r)
    mask_pix = jnp.repeat(jnp.repeat(mask.astype(jnp.float32), patch_size, 1),
                          patch_size, 2)[:, None, :, :]
    l1 = jnp.abs(x - x_rec)
    return (l1 * mask_pix).sum() / (mask_pix.sum() + 1e-5) / jnp.float32(C)


# ----------------------------------------------------------------------------
def init_params(key, *, in_chans, patch_size, num_features, encoder_stride):
    P = in_chans * patch_size * patch_size
    Co = encoder_stride ** 2 * 3
    k = jax.random.split(key, 5)
    return {
        "enc_w": 0.02 * jax.random.normal(k[0], (P, num_features), jnp.float32),
        "enc_b": 0.01 * jax.random.normal(k[1], (1, num_features), jnp.float32),
        "mask_token": 0.02 * jax.random.normal(k[2], (1, num_features), jnp.float32),
        "dec_w": 0.02 * jax.random.normal(k[3], (num_features, Co), jnp.float32),
        "dec_b": 0.01 * jax.random.normal(k[4], (1, Co), jnp.float32),
    }


if __name__ == "__main__":
    B, C, H, W = 2, 3, 16, 16
    patch_size = 4
    encoder_stride = 4
    num_features = 128          # multiple of 128 -> lane-dense feature dim
    Hp, Wp = H // patch_size, W // patch_size

    key = jax.random.PRNGKey(0)
    kx, km, kp = jax.random.split(key, 3)

    x = jax.random.normal(kx, (B, C, H, W), jnp.float32)
    mask = (jax.random.uniform(km, (B, Hp, Wp)) > 0.5).astype(jnp.float32)
    params = init_params(kp, in_chans=C, patch_size=patch_size,
                         num_features=num_features,
                         encoder_stride=encoder_stride)
    prepped = prepare_params(params)      # one-time pad/cast (hoisted)

    loss = simmim_pretrain_forward(x, mask, prepped,
                                   patch_size=patch_size,
                                   encoder_stride=encoder_stride)
    loss = jax.block_until_ready(loss)

    ref = jax.block_until_ready(
        _reference_loss(x, mask, params, patch_size=patch_size,
                        encoder_stride=encoder_stride))

    assert loss.shape == () and bool(jnp.isfinite(loss))
    assert abs(float(loss) - float(ref)) <= 2e-2 * max(abs(float(ref)), 1e-3), (
        float(loss), float(ref))
    print("KERNEL_OK")
</pallas_src>

<mosaic_0001>
module attributes {stable_mosaic.version = 11 : i64} {
  func.func @_simmim_fused_kernel(%arg0: i32, %arg1: memref<16x48xf32, #tpu.memory_space<vmem>>, %arg2: memref<16x1xf32, #tpu.memory_space<vmem>>, %arg3: memref<48x128xbf16, #tpu.memory_space<vmem>>, %arg4: memref<1x128xf32, #tpu.memory_space<vmem>>, %arg5: memref<1x128xf32, #tpu.memory_space<vmem>>, %arg6: memref<128x48xbf16, #tpu.memory_space<vmem>>, %arg7: memref<1x48xf32, #tpu.memory_space<vmem>>, %arg8: memref<1x8x48xf32, #tpu.memory_space<vmem>>) attributes {dimension_semantics = [#tpu.dimension_semantics<parallel>], iteration_bounds = array<i64: 2>, scalar_prefetch = 0 : i64, scratch_operands = 0 : i64, tpu.core_type = #tpu.core_type<tc>, window_params = [{transform_indices = @transform_0, window_bounds = array<i64: 16, 48>}, {transform_indices = @transform_1, window_bounds = array<i64: 16, 1>}, {pipeline_mode = #tpu.pipeline_mode<synchronous>, transform_indices = @transform_2, window_bounds = array<i64: 48, 128>}, {pipeline_mode = #tpu.pipeline_mode<synchronous>, transform_indices = @transform_3, window_bounds = array<i64: 1, 128>}, {pipeline_mode = #tpu.pipeline_mode<synchronous>, transform_indices = @transform_4, window_bounds = array<i64: 1, 128>}, {pipeline_mode = #tpu.pipeline_mode<synchronous>, transform_indices = @transform_5, window_bounds = array<i64: 128, 48>}, {pipeline_mode = #tpu.pipeline_mode<synchronous>, transform_indices = @transform_6, window_bounds = array<i64: 1, 48>}, {transform_indices = @transform_7, window_bounds = array<i64: 1, 8, 48>}]} {
    %c0 = arith.constant 0 : index
    %c0_0 = arith.constant 0 : index
    %0 = vector.load %arg1[%c0, %c0_0] : memref<16x48xf32, #tpu.memory_space<vmem>>, vector<16x48xf32>
    %c0_1 = arith.constant 0 : index
    %c0_2 = arith.constant 0 : index
    %1 = vector.load %arg2[%c0_1, %c0_2] : memref<16x1xf32, #tpu.memory_space<vmem>>, vector<16x1xf32>
    %cst = arith.constant 0.000000e+00 : f32
    %2 = vector.broadcast %cst : f32 to vector<16x1xf32>
    %3 = arith.cmpf ogt, %1, %2 : vector<16x1xf32>
    %4 = arith.truncf %0 : vector<16x48xf32> to vector<16x48xbf16>
    %c0_3 = arith.constant 0 : index
    %c0_4 = arith.constant 0 : index
    %5 = vector.load %arg3[%c0_3, %c0_4] : memref<48x128xbf16, #tpu.memory_space<vmem>>, vector<48x128xbf16>
    %cst_5 = arith.constant dense<0.000000e+00> : vector<16x128xf32>
    %6 = tpu.matmul %4, %5, %cst_5 {dimension_numbers = #tpu.dot_dimension_numbers<[1], [0], [0], [1], [0, 0, 1, 1], [], []>} : vector<16x48xbf16>, vector<48x128xbf16>, vector<16x128xf32> -> vector<16x128xf32>
    %c0_6 = arith.constant 0 : index
    %c0_7 = arith.constant 0 : index
    %7 = vector.load %arg4[%c0_6, %c0_7] : memref<1x128xf32, #tpu.memory_space<vmem>>, vector<1x128xf32>
    %8 = vector.broadcast %7 : vector<1x128xf32> to vector<16x128xf32>
    %9 = arith.addf %6, %8 : vector<16x128xf32>
    %c0_8 = arith.constant 0 : index
    %c0_9 = arith.constant 0 : index
    %10 = vector.load %arg5[%c0_8, %c0_9] : memref<1x128xf32, #tpu.memory_space<vmem>>, vector<1x128xf32>
    %11 = vector.shape_cast %3 : vector<16x1xi1> to vector<16x1xi1>
    %12 = vector.broadcast %11 : vector<16x1xi1> to vector<16x128xi1>
    %13 = vector.shape_cast %10 : vector<1x128xf32> to vector<1x128xf32>
    %14 = vector.broadcast %13 : vector<1x128xf32> to vector<16x128xf32>
    %15 = arith.select %12, %14, %9 : vector<16x128xi1>, vector<16x128xf32>
    %16 = arith.truncf %15 : vector<16x128xf32> to vector<16x128xbf16>
    %c0_10 = arith.constant 0 : index
    %c0_11 = arith.constant 0 : index
    %17 = vector.load %arg6[%c0_10, %c0_11] : memref<128x48xbf16, #tpu.memory_space<vmem>>, vector<128x48xbf16>
    %cst_12 = arith.constant dense<0.000000e+00> : vector<16x48xf32>
    %18 = tpu.matmul %16, %17, %cst_12 {dimension_numbers = #tpu.dot_dimension_numbers<[1], [0], [0], [1], [0, 0, 1, 1], [], []>} : vector<16x128xbf16>, vector<128x48xbf16>, vector<16x48xf32> -> vector<16x48xf32>
    %c0_13 = arith.constant 0 : index
    %c0_14 = arith.constant 0 : index
    %19 = vector.load %arg7[%c0_13, %c0_14] : memref<1x48xf32, #tpu.memory_space<vmem>>, vector<1x48xf32>
    %20 = vector.broadcast %19 : vector<1x48xf32> to vector<16x48xf32>
    %21 = arith.addf %18, %20 : vector<16x48xf32>
    %22 = arith.subf %0, %21 : vector<16x48xf32>
    %23 = math.absf %22 : vector<16x48xf32>
    %cst_15 = arith.constant 0.000000e+00 : f32
    %24 = vector.shape_cast %3 : vector<16x1xi1> to vector<16x1xi1>
    %25 = vector.broadcast %24 : vector<16x1xi1> to vector<16x48xi1>
    %26 = vector.broadcast %cst_15 : f32 to vector<16x48xf32>
    %27 = arith.select %25, %23, %26 : vector<16x48xi1>, vector<16x48xf32>
    %28 = vector.shape_cast %27 : vector<16x48xf32> to vector<2x8x48xf32>
    %cst_16 = arith.constant dense<0.000000e+00> : vector<8x48xf32>
    %29 = vector.multi_reduction <add>, %28, %cst_16 [0] : vector<2x8x48xf32> to vector<8x48xf32>
    %30 = vector.shape_cast %29 : vector<8x48xf32> to vector<1x8x48xf32>
    %c0_17 = arith.constant 0 : index
    %c0_18 = arith.constant 0 : index
    %c0_19 = arith.constant 0 : index
    %31 = vector.load %arg8[%c0_17, %c0_18, %c0_19] : memref<1x8x48xf32, #tpu.memory_space<vmem>>, vector<1x8x48xf32>
    tpu.vector_store %arg8[%c0_17, %c0_18, %c0_19], %30 {strides = array<i32>} : memref<1x8x48xf32, #tpu.memory_space<vmem>>, vector<1x8x48xf32>,
    return
  }
  func.func @transform_0(%arg0: i32) -> (i32, i32) {
    %c0_i32 = arith.constant 0 : i32
    %c0_i32_0 = arith.constant 0 : i32
    return %arg0, %c0_i32 : i32, i32
  }
  func.func @transform_1(%arg0: i32) -> (i32, i32) {
    %c0_i32 = arith.constant 0 : i32
    %c0_i32_0 = arith.constant 0 : i32
    return %arg0, %c0_i32 : i32, i32
  }
  func.func @transform_2(%arg0: i32) -> (i32, i32) {
    %c0_i32 = arith.constant 0 : i32
    %c0_i32_0 = arith.constant 0 : i32
    %c0_i32_1 = arith.constant 0 : i32
    return %c0_i32, %c0_i32_0 : i32, i32
  }
  func.func @transform_3(%arg0: i32) -> (i32, i32) {
    %c0_i32 = arith.constant 0 : i32
    %c0_i32_0 = arith.constant 0 : i32
    %c0_i32_1 = arith.constant 0 : i32
    return %c0_i32, %c0_i32_0 : i32, i32
  }
  func.func @transform_4(%arg0: i32) -> (i32, i32) {
    %c0_i32 = arith.constant 0 : i32
    %c0_i32_0 = arith.constant 0 : i32
    %c0_i32_1 = arith.constant 0 : i32
    return %c0_i32, %c0_i32_0 : i32, i32
  }
  func.func @transform_5(%arg0: i32) -> (i32, i32) {
    %c0_i32 = arith.constant 0 : i32
    %c0_i32_0 = arith.constant 0 : i32
    %c0_i32_1 = arith.constant 0 : i32
    return %c0_i32, %c0_i32_0 : i32, i32
  }
  func.func @transform_6(%arg0: i32) -> (i32, i32) {
    %c0_i32 = arith.constant 0 : i32
    %c0_i32_0 = arith.constant 0 : i32
    %c0_i32_1 = arith.constant 0 : i32
    return %c0_i32, %c0_i32_0 : i32, i32
  }
  func.func @transform_7(%arg0: i32) -> (i32, i32, i32) {
    %c0_i32 = arith.constant 0 : i32
    %c0_i32_0 = arith.constant 0 : i32
    %c0_i32_1 = arith.constant 0 : i32
    return %arg0, %c0_i32, %c0_i32_0 : i32, i32, i32
  }
}

</mosaic_0001>

<llo_original>
// kernel: tpu_custom_call.1
$region0: #{tpu_custom_call.1}
  #allocation0 [shape = 'u32[]', space=smem, size = 0x4, offset = 0x4, fixed_abs, tag = 'smem constant byte address 0x4 - core index']
  #allocation1 [shape = 'u32[144,128]{1,0:T(1,128)}', space=vmem, size = 0x12000, scoped, tag = 'internal scratch']
  %s0 = inlined_call_operand.vmem [shape: f32[32,48], index: 0, kind: input, shape index: {}]
  %s1 = inlined_call_operand.vmem [shape: f32[32,1], index: 1, kind: input, shape index: {}]
  %s2 = inlined_call_operand.vmem [shape: bf16[48,128], index: 2, kind: input, shape index: {}]
  %s3 = inlined_call_operand.vmem [shape: f32[1,128], index: 3, kind: input, shape index: {}]
  %s4 = inlined_call_operand.vmem [shape: f32[1,128], index: 4, kind: input, shape index: {}]
  %s5 = inlined_call_operand.vmem [shape: bf16[128,48], index: 5, kind: input, shape index: {}]
  %s6 = inlined_call_operand.vmem [shape: f32[1,48], index: 6, kind: input, shape index: {}]
  %s7 = inlined_call_operand.hbm [shape: f32[2,8,48], index: 7, kind: output, shape index: {}]
  %s8 = sld [smem:[#allocation0]]
  $region61: #{tpu_custom_call.1} parent=0
    _
  %s10 = ssub.s32 1, %s8
  %s11 = scalar_select 0, %s10, %s8
  $region1: #{tpu_custom_call.1} parent=0
    #allocation2 [shape = 'u8[8192]{0}', space=vmem, size = 0x2000, scoped, tag = 'output window, operand 0']
    #allocation3 [shape = 's32[2]{0}', space=sflag, size = 0x8, scoped, tag = 'scoped memory for tpu_custom_call.1']
    %12 = vsyncpa [#allocation3], 0
    %s13 = scalar_lea.sflag [#allocation3], 1
    %14 = vsyncpa %s13, 0
    loop: start=0, step=1, limit=4
    $region2: #{tpu_custom_call.1} parent=1 // loop_pre_header
      _
    $region3: #{tpu_custom_call.1} parent=1 // loop_header
      %s16 = sphi 0, %s20
      %p17 = scmp.ge.s32.totalorder %s16, 4
      %s26 = sphi 0, %s28
      %s29 = sphi 0, %s26
      %s30 = sphi 0, %s29
      %s46 = sphi 0, %s30
      %s52 = sphi 0, %s54
      %s55 = sphi 0, %s52
      %s56 = sphi 0, %s55
      %s72 = sphi 0, %s56
      %s76 = sphi 0, %s76
      %s78 = sphi 0, %s76
      %s79 = sphi 0, %s78
      %s93 = sphi 0, %s79
      %s97 = sphi 0, %s97
      %s99 = sphi 0, %s97
      %s100 = sphi 0, %s99
      %s114 = sphi 0, %s100
      %s118 = sphi 0, %s118
      %s120 = sphi 0, %s118
      %s121 = sphi 0, %s120
      %s135 = sphi 0, %s121
      %s139 = sphi 0, %s139
      %s141 = sphi 0, %s139
      %s142 = sphi 0, %s141
      %s156 = sphi 0, %s142
      %s160 = sphi 0, %s160
      %s162 = sphi 0, %s160
      %s163 = sphi 0, %s162
      %s177 = sphi 0, %s163
      %s183 = sphi 0, %s185
      %s186 = sphi 0, %s183
      %s187 = sphi 0, %s186
      %s203 = sphi 0, %s187
    $region4: #{tpu_custom_call.1} parent=1 // loop_header_branch
      %19 = sbr.rel (%p17) target = $region8
    $region5: #{tpu_custom_call.1} parent=1 // loop_body
      %s21 = ssub.s32 %s16, 1
      %s22 = ssub.s32 %s16, 2
      %s23 = sadd.s32 %s16, 1
      %s24 = ssub.s32 %s16, %s23
      %p25 = scmp.eq.s32.totalorder %s24, 0
      %s27 = sadd.s32 %s26, 1
      %s28 = scalar_select %p25, %s26, %s27
      %p31 = pneg %p25
      %p32 = scmp.eq.s32.totalorder %s16, 1
      %p33 = por %p31, %p32
      %p34 = scmp.ne.s32.totalorder %s26, %s29
      %p35 = scmp.eq.s32.totalorder %s16, 0
      %p36 = por %p34, %p35
      %p37 = scmp.ne.s32.totalorder %s26, %s29
      %p38 = scmp.eq.s32.totalorder %s21, 1
      %p39 = por %p37, %p38
      %p40 = scmp.ne.s32.totalorder %s29, %s30
      %p41 = scmp.eq.s32.totalorder %s21, 0
      %p42 = por %p40, %p41
      %p43 = scmp.ne.s32.totalorder %s29, %s30
      %p44 = scmp.eq.s32.totalorder %s22, 1
      %p45 = por %p43, %p44
      %p47 = scmp.ne.s32.totalorder %s30, %s46
      %p48 = scmp.eq.s32.totalorder %s22, 0
      %p49 = por %p47, %p48
      %s50 = ssub.s32 %s16, %s23
      %p51 = scmp.eq.s32.totalorder %s50, 0
      %s53 = sadd.s32 %s52, 1
      %s54 = scalar_select %p51, %s52, %s53
      %p57 = pneg %p51
      %p58 = scmp.eq.s32.totalorder %s16, 1
      %p59 = por %p57, %p58
      %p60 = scmp.ne.s32.totalorder %s52, %s55
      %p61 = scmp.eq.s32.totalorder %s16, 0
      %p62 = por %p60, %p61
      %p63 = scmp.ne.s32.totalorder %s52, %s55
      %p64 = scmp.eq.s32.totalorder %s21, 1
      %p65 = por %p63, %p64
      %p66 = scmp.ne.s32.totalorder %s55, %s56
      %p67 = scmp.eq.s32.totalorder %s21, 0
      %p68 = por %p66, %p67
      %p69 = scmp.ne.s32.totalorder %s55, %s56
      %p70 = scmp.eq.s32.totalorder %s22, 1
      %p71 = por %p69, %p70
      %p73 = scmp.ne.s32.totalorder %s56, %s72
      %p74 = scmp.eq.s32.totalorder %s22, 0
      %p75 = por %p73, %p74
      %s77 = sadd.s32 %s76, 1
      %p80 = scmp.eq.s32.totalorder %s16, 1
      %p81 = scmp.ne.s32.totalorder %s76, %s78
      %p82 = scmp.eq.s32.totalorder %s16, 0
      %p83 = por %p81, %p82
      %p84 = scmp.ne.s32.totalorder %s76, %s78
      %p85 = scmp.eq.s32.totalorder %s21, 1
      %p86 = por %p84, %p85
      %p87 = scmp.ne.s32.totalorder %s78, %s79
      %p88 = scmp.eq.s32.totalorder %s21, 0
      %p89 = por %p87, %p88
      %p90 = scmp.ne.s32.totalorder %s78, %s79
      %p91 = scmp.eq.s32.totalorder %s22, 1
      %p92 = por %p90, %p91
      %p94 = scmp.ne.s32.totalorder %s79, %s93
      %p95 = scmp.eq.s32.totalorder %s22, 0
      %p96 = por %p94, %p95
      %s98 = sadd.s32 %s97, 1
      %p101 = scmp.eq.s32.totalorder %s16, 1
      %p102 = scmp.ne.s32.totalorder %s97, %s99
      %p103 = scmp.eq.s32.totalorder %s16, 0
      %p104 = por %p102, %p103
      %p105 = scmp.ne.s32.totalorder %s97, %s99
      %p106 = scmp.eq.s32.totalorder %s21, 1
      %p107 = por %p105, %p106
      %p108 = scmp.ne.s32.totalorder %s99, %s100
      %p109 = scmp.eq.s32.totalorder %s21, 0
      %p110 = por %p108, %p109
      %p111 = scmp.ne.s32.totalorder %s99, %s100
      %p112 = scmp.eq.s32.totalorder %s22, 1
      %p113 = por %p111, %p112
      %p115 = scmp.ne.s32.totalorder %s100, %s114
      %p116 = scmp.eq.s32.totalorder %s22, 0
      %p117 = por %p115, %p116
      %s119 = sadd.s32 %s118, 1
      %p122 = scmp.eq.s32.totalorder %s16, 1
      %p123 = scmp.ne.s32.totalorder %s118, %s120
      %p124 = scmp.eq.s32.totalorder %s16, 0
      %p125 = por %p123, %p124
      %p126 = scmp.ne.s32.totalorder %s118, %s120
      %p127 = scmp.eq.s32.totalorder %s21, 1
      %p128 = por %p126, %p127
      %p129 = scmp.ne.s32.totalorder %s120, %s121
      %p130 = scmp.eq.s32.totalorder %s21, 0
      %p131 = por %p129, %p130
      %p132 = scmp.ne.s32.totalorder %s120, %s121
      %p133 = scmp.eq.s32.totalorder %s22, 1
      %p134 = por %p132, %p133
      %p136 = scmp.ne.s32.totalorder %s121, %s135
      %p137 = scmp.eq.s32.totalorder %s22, 0
      %p138 = por %p136, %p137
      %s140 = sadd.s32 %s139, 1
      %p143 = scmp.eq.s32.totalorder %s16, 1
      %p144 = scmp.ne.s32.totalorder %s139, %s141
      %p145 = scmp.eq.s32.totalorder %s16, 0
      %p146 = por %p144, %p145
      %p147 = scmp.ne.s32.totalorder %s139, %s141
      %p148 = scmp.eq.s32.totalorder %s21, 1
      %p149 = por %p147, %p148
      %p150 = scmp.ne.s32.totalorder %s141, %s142
      %p151 = scmp.eq.s32.totalorder %s21, 0
      %p152 = por %p150, %p151
      %p153 = scmp.ne.s32.totalorder %s141, %s142
      %p154 = scmp.eq.s32.totalorder %s22, 1
      %p155 = por %p153, %p154
      %p157 = scmp.ne.s32.totalorder %s142, %s156
      %p158 = scmp.eq.s32.totalorder %s22, 0
      %p159 = por %p157, %p158
      %s161 = sadd.s32 %s160, 1
      %p164 = scmp.eq.s32.totalorder %s16, 1
      %p165 = scmp.ne.s32.totalorder %s160, %s162
      %p166 = scmp.eq.s32.totalorder %s16, 0
      %p167 = por %p165, %p166
      %p168 = scmp.ne.s32.totalorder %s160, %s162
      %p169 = scmp.eq.s32.totalorder %s21, 1
      %p170 = por %p168, %p169
      %p171 = scmp.ne.s32.totalorder %s162, %s163
      %p172 = scmp.eq.s32.totalorder %s21, 0
      %p173 = por %p171, %p172
      %p174 = scmp.ne.s32.totalorder %s162, %s163
      %p175 = scmp.eq.s32.totalorder %s22, 1
      %p176 = por %p174, %p175
      %p178 = scmp.ne.s32.totalorder %s163, %s177
      %p179 = scmp.eq.s32.totalorder %s22, 0
      %p180 = por %p178, %p179
      %s181 = ssub.s32 %s16, %s23
      %p182 = scmp.eq.s32.totalorder %s181, 0
      %s184 = sadd.s32 %s183, 1
      %s185 = scalar_select %p182, %s183, %s184
      %p188 = pneg %p182
      %p189 = scmp.eq.s32.totalorder %s16, 1
      %p190 = por %p188, %p189
      %p191 = scmp.ne.s32.totalorder %s183, %s186
      %p192 = scmp.eq.s32.totalorder %s16, 0
      %p193 = por %p191, %p192
      %p194 = scmp.ne.s32.totalorder %s183, %s186
      %p195 = scmp.eq.s32.totalorder %s21, 1
      %p196 = por %p194, %p195
      %p197 = scmp.ne.s32.totalorder %s186, %s187
      %p198 = scmp.eq.s32.totalorder %s21, 0
      %p199 = por %p197, %p198
      %p200 = scmp.ne.s32.totalorder %s186, %s187
      %p201 = scmp.eq.s32.totalorder %s22, 1
      %p202 = por %p200, %p201
      %p204 = scmp.ne.s32.totalorder %s187, %s203
      %p205 = scmp.eq.s32.totalorder %s22, 0
      %p206 = por %p204, %p205
      %p207 = scmp.le.s32.totalorder 1, %s16
      %p208 = scmp.lt.s32.totalorder %s16, 3
      %p209 = pnand %p207, %p208
      %p210 = pneg %p209
      // Predicated region
      $region9: #{tpu_custom_call.1} parent=5 // pred_check
        _
      $region10: #{tpu_custom_call.1} parent=5 // pred_check_branch
        %212 = sbr.rel (%p209) target = $region12
      $region11: #{tpu_custom_call.1} parent=5 // pred_region
        %s213 = ssub.s32 %s16, 1
        // Predicated region
        $region13: #{tpu_custom_call.1} parent=11 // pred_check
          %p214 = pneg %p89
        $region14: #{tpu_custom_call.1} parent=11 // pred_check_branch
          %216 = sbr.rel (%p214) target = $region16
        $region15: #{tpu_custom_call.1} parent=11 // pred_region
          _
        $region16: #{tpu_custom_call.1} parent=11 // pred_fallthru
          _
        // Predicated region
        $region17: #{tpu_custom_call.1} parent=11 // pred_check
          %p217 = pneg %p110
        $region18: #{tpu_custom_call.1} parent=11 // pred_check_branch
          %219 = sbr.rel (%p217) target = $region20
        $region19: #{tpu_custom_call.1} parent=11 // pred_region
          _
        $region20: #{tpu_custom_call.1} parent=11 // pred_fallthru
          _
        // Predicated region
        $region21: #{tpu_custom_call.1} parent=11 // pred_check
          %p220 = pneg %p131
        $region22: #{tpu_custom_call.1} parent=11 // pred_check_branch
          %222 = sbr.rel (%p220) target = $region24
        $region23: #{tpu_custom_call.1} parent=11 // pred_region
          _
        $region24: #{tpu_custom_call.1} parent=11 // pred_fallthru
          _
        // Predicated region
        $region25: #{tpu_custom_call.1} parent=11 // pred_check
          %p223 = pneg %p152
        $region26: #{tpu_custom_call.1} parent=11 // pred_check_branch
          %225 = sbr.rel (%p223) target = $region28
        $region27: #{tpu_custom_call.1} parent=11 // pred_region
          _
        $region28: #{tpu_custom_call.1} parent=11 // pred_fallthru
          _
        // Predicated region
        $region29: #{tpu_custom_call.1} parent=11 // pred_check
          %p226 = pneg %p173
        $region30: #{tpu_custom_call.1} parent=11 // pred_check_branch
          %228 = sbr.rel (%p226) target = $region32
        $region31: #{tpu_custom_call.1} parent=11 // pred_region
          _
        $region32: #{tpu_custom_call.1} parent=11 // pred_fallthru
          _
      $region12: #{tpu_custom_call.1} parent=5 // pred_fallthru
        _
      %p229 = scmp.lt.s32.totalorder %s16, 2
      // Predicated region
      $region33: #{tpu_custom_call.1} parent=5 // pred_check
        %p230 = pneg %p229
      $region34: #{tpu_custom_call.1} parent=5 // pred_check_branch
        %232 = sbr.rel (%p230) target = $region36
      $region35: #{tpu_custom_call.1} parent=5 // pred_region
        // Predicated region
        $region37: #{tpu_custom_call.1} parent=35 // pred_check
          %p233 = pneg %p36
        $region38: #{tpu_custom_call.1} parent=35 // pred_check_branch
          %235 = sbr.rel (%p233) target = $region40
        $region39: #{tpu_custom_call.1} parent=35 // pred_region
          %s236 = smul.u32 2, %s16
          %p237 = scmp.lt.s32.totalorder %s236, 3
          %s238 = scalar_select %p237, %s236, 3
          %s239 = smul.addr %s238, 8
          %s240 = scalar_lea.vmem %s0, %s239
          %s241 = smul.u32 2, %s16
        $region40: #{tpu_custom_call.1} parent=35 // pred_fallthru
          _
        // Predicated region
        $region41: #{tpu_custom_call.1} parent=35 // pred_check
          %p242 = pneg %p62
        $region42: #{tpu_custom_call.1} parent=35 // pred_check_branch
          %244 = sbr.rel (%p242) target = $region44
        $region43: #{tpu_custom_call.1} parent=35 // pred_region
          %s245 = smul.u32 2, %s16
          %p246 = scmp.lt.s32.totalorder %s245, 3
          %s247 = scalar_select %p246, %s245, 3
          %s248 = smul.addr %s247, 8
          %s249 = scalar_lea.vmem %s1, %s248
          %s250 = smul.u32 2, %s16
        $region44: #{tpu_custom_call.1} parent=35 // pred_fallthru
          _
      $region36: #{tpu_custom_call.1} parent=5 // pred_fallthru
        _
      %p251 = scmp.le.s32.totalorder 1, %s16
      %p252 = scmp.lt.s32.totalorder %s16, 3
      %p253 = pnand %p251, %p252
      %p254 = pneg %p253
      // Predicated region
      $region45: #{tpu_custom_call.1} parent=5 // pred_check
        _
      $region46: #{tpu_custom_call.1} parent=5 // pred_check_branch
        %256 = sbr.rel (%p253) target = $region48
      $region47: #{tpu_custom_call.1} parent=5 // pred_region
        %s257 = ssub.s32 %s16, 1
        %s258 = smul.u32 2, %s21
        %p259 = scmp.lt.s32.totalorder %s258, 3
        %s260 = scalar_select %p259, %s258, 3
        %s261 = smul.addr %s260, 8
        %s262 = scalar_lea.vmem %s0, %s261
        %p263 = pneg %p42
        %p264 = pneg %p39
        %s265 = smul.u32 2, %s21
        %p266 = scmp.lt.s32.totalorder %s265, 3
        %s267 = scalar_select %p266, %s265, 3
        %s268 = smul.addr %s267, 8
        %s269 = scalar_lea.vmem %s1, %s268
        %p270 = pneg %p68
        %p271 = pneg %p65
        %p272 = pneg %p89
        %p273 = pneg %p86
        %p274 = pneg %p110
        %p275 = pneg %p107
        %p276 = pneg %p131
        %p277 = pneg %p128
        %p278 = pneg %p152
        %p279 = pneg %p149
        %p280 = pneg %p173
        %p281 = pneg %p170
        %p282 = pneg %p199
        %p283 = pneg %p196
        %s284 = sand.u32 %s186, 1
        %s285 = scalar_lea.sflag [#allocation3], %s284
        %s286 = sand.u32 %s186, 1
        %s287 = smul.addr %s286, 8
        %s288 = scalar_lea.vmem [#allocation2], %s287
        %s289 = smul.u32 2, %s21
        %p290 = scmp.lt.s32.totalorder %s289, 3
        %s291 = scalar_select %p290, %s289, 3
        %s292 = smul.addr %s291, 8
        %s293 = scalar_lea.vmem %s0, %s292
        %s294 = smul.u32 2, %s21
        %s295 = smul.u32 2, %s21
        %p296 = scmp.lt.s32.totalorder %s295, 3
        %s297 = scalar_select %p296, %s295, 3
        %s298 = smul.addr %s297, 8
        %s299 = scalar_lea.vmem %s1, %s298
        %s300 = smul.u32 2, %s21
        %v302 = vld [vmem:[%s293] sm:$0xff]
        %v303 = vld [vmem:[%s293 + $0x8] sm:$0xff]
        %v304 = vld [vmem:[%s299] sm:$0xff]
        %v305 = vld [vmem:[%s299 + $0x8] sm:$0xff]
        %vm306 = vcmp.gt.f32.partialorder %v304, 0.0
        %vm307 = vcmp.gt.f32.partialorder %v305, 0.0
        %v308 = vpack.c.bf16 %v303, %v302
        %v309 = vld [vmem:[%s2] sm:$0xf]
        %v310 = vld [vmem:[%s2 + $0x4] sm:$0xf]
        %v311 = vld [vmem:[%s2 + $0x8] sm:$0xf]
        %v312 = vld [vmem:[%s2 + $0xc] sm:$0xf]
        %v313 = vld [vmem:[%s2 + $0x10] sm:$0xf]
        %v314 = vld [vmem:[%s2 + $0x14] sm:$0xf]
        %v315 = vld [vmem:[%s3] sm:$0x1]
        %v317 = vlaneseq
        %v318 = vshrl.u32 %v317, 7
        %v319 = vsub.s32 0, %v318
        %v320 = vrot.slane %v315, %v319
        %v328 = vunpack.c.l.b16 %v309
        %v329 = vunpack.c.l.b16 %v310
        %v330 = vunpack.c.l.b16 %v311
        %v331 = vunpack.c.l.b16 %v312
        %v332 = vunpack.c.l.b16 %v313
        %v333 = vunpack.c.l.b16 %v314
        %v334 = vpack.c.b16 %v329, %v328
        %v335 = vpack.c.b16 %v331, %v330
        %v336 = vpack.c.b16 %v333, %v332
        %vm340 = vcmask 392192
        %v342 = vsel %vm340, %v308, 0
        %344 = vmatprep.subr.bf16.mxu0 0
        %345 = vmatpush1.bf16.msra.mxu0 0
        %346 = vmatprep.subr.bf16.mxu0 0
        %347 = vmatpush1.bf16.msra.mxu0 0
        %348 = vmatprep.subr.bf16.mxu0 0
        %349 = vmatpush1.bf16.msra.mxu0 0
        %350 = vmatprep.subr.bf16.mxu0 0
        %351 = vmatpush1.bf16.msra.mxu0 0
        %352 = vmatprep.subr.bf16.mxu0 0
        %353 = vmatpush1.bf16.msra.mxu0 0
        %354 = vmatprep.subr.bf16.mxu0 0
        %355 = vmatpush1.bf16.msra.mxu0 %v336
        %356 = vmatprep.subr.bf16.mxu0 0
        %357 = vmatpush1.bf16.msra.mxu0 %v335
        %358 = vmatprep.subr.bf16.mxu0 0
        %359 = vmatpush1.bf16.msra.mxu0 %v334
        %360 = vmatprep.subr.bf16.mxu0 0
        %361 = vmatpush2.bf16.msra.mxu0 0
        %362 = vmatprep.subr.bf16.mxu0 0
        %363 = vmatpush2.bf16.msra.mxu0 0
        %364 = vmatprep.subr.bf16.mxu0 0
        %365 = vmatpush2.bf16.msra.mxu0 0
        %366 = vmatprep.subr.bf16.mxu0 0
        %367 = vmatpush2.bf16.msra.mxu0 0
        %368 = vmatprep.subr.bf16.mxu0 0
        %369 = vmatpush2.bf16.msra.mxu0 0
        %370 = vmatprep.subr.bf16.mxu0 0
        %371 = vmatpush2.bf16.msra.mxu0 0
        %372 = vmatprep.subr.bf16.mxu0 0
        %373 = vmatpush2.bf16.msra.mxu0 0
        %374 = vmatprep.subr.bf16.mxu0 0
        %375 = vmatpush2.bf16.msra.mxu0 0
        %376 = vmatprep.mubr.bf16.mxu0 0
        %377 = vmatmul.mubr.bf16.gmra.mxu0 %v342
        %v378 = vpop.f32.mrf.mxu0
        %v379 = vadd.f32 %v320, %v378
        %v380 = vpop.f32.mrf.mxu0
        %v381 = vpop.f32.mrf.mxu0
        %v382 = vadd.f32 %v320, %v381
        %v383 = vpop.f32.mrf.mxu0
        %384 = vdwg.mxu0
        %v385 = vld [vmem:[%s4] sm:$0x1]
        %v386 = vsel %vm306, 1, 0
        %v387 = vsel %vm307, 1, 0
        %388 = vset.pattern.permute.xlu0 0
        %389 = vperm.xlu0 %388, %v386
        %v390 = vpop.permute.xlu0 %389
        %391 = vset.pattern.permute.xlu0 0
        %392 = vperm.xlu0 %391, %v387
        %v393 = vpop.permute.xlu0 %392
        %vm394 = vcmp.eq.s32.totalorder %v390, 1
        %vm395 = vcmp.eq.s32.totalorder %v393, 1
        %v397 = vlaneseq
        %v398 = vshrl.u32 %v397, 7
        %v399 = vsub.s32 0, %v398
        %v400 = vrot.slane %v385, %v399
        %v402 = vsel %vm394, %v400, %v379
        %v403 = vsel %vm395, %v400, %v382
        %v404 = vpack.c.bf16 %v403, %v402
        %v405 = vld [vmem:[%s5] sm:$0xf]
        %v406 = vld [vmem:[%s5 + $0x4] sm:$0xf]
        %v407 = vld [vmem:[%s5 + $0x8] sm:$0xf]
        %v408 = vld [vmem:[%s5 + $0xc] sm:$0xf]
        %v409 = vld [vmem:[%s5 + $0x10] sm:$0xf]
        %v410 = vld [vmem:[%s5 + $0x14] sm:$0xf]
        %v411 = vld [vmem:[%s5 + $0x18] sm:$0xf]
        %v412 = vld [vmem:[%s5 + $0x1c] sm:$0xf]
        %v413 = vld [vmem:[%s5 + $0x20] sm:$0xf]
        %v414 = vld [vmem:[%s5 + $0x24] sm:$0xf]
        %v415 = vld [vmem:[%s5 + $0x28] sm:$0xf]
        %v416 = vld [vmem:[%s5 + $0x2c] sm:$0xf]
        %v417 = vld [vmem:[%s5 + $0x30] sm:$0xf]
        %v418 = vld [vmem:[%s5 + $0x34] sm:$0xf]
        %v419 = vld [vmem:[%s5 + $0x38] sm:$0xf]
        %v420 = vld [vmem:[%s5 + $0x3c] sm:$0xf]
        %v421 = vld [vmem:[%s6] sm:$0x1]
        %v423 = vlaneseq
        %v424 = vshrl.u32 %v423, 7
        %v425 = vsub.s32 0, %v424
        %v426 = vrot.slane %v421, %v425
        %v444 = vunpack.c.l.b16 %v405
        %v445 = vunpack.c.l.b16 %v406
        %v446 = vunpack.c.l.b16 %v407
        %v447 = vunpack.c.l.b16 %v408
        %v448 = vunpack.c.l.b16 %v409
        %v449 = vunpack.c.l.b16 %v410
        %v450 = vunpack.c.l.b16 %v411
        %v451 = vunpack.c.l.b16 %v412
        %v452 = vunpack.c.l.b16 %v413
        %v453 = vunpack.c.l.b16 %v414
        %v454 = vunpack.c.l.b16 %v415
        %v455 = vunpack.c.l.b16 %v416
        %v456 = vunpack.c.l.b16 %v417
        %v457 = vunpack.c.l.b16 %v418
        %v458 = vunpack.c.l.b16 %v419
        %v459 = vunpack.c.l.b16 %v420
        %v460 = vpack.c.b16 %v445, %v444
        %v461 = vpack.c.b16 %v447, %v446
        %v462 = vpack.c.b16 %v449, %v448
        %v463 = vpack.c.b16 %v451, %v450
        %v464 = vpack.c.b16 %v453, %v452
        %v465 = vpack.c.b16 %v455, %v454
        %v466 = vpack.c.b16 %v457, %v456
        %v467 = vpack.c.b16 %v459, %v458
        %476 = vmatprep.subr.bf16.mxu0 0
        %477 = vmatpush1.bf16.msra.mxu0 %v467
        %478 = vmatprep.subr.bf16.mxu0 0
        %479 = vmatpush1.bf16.msra.mxu0 %v466
        %480 = vmatprep.subr.bf16.mxu0 0
        %481 = vmatpush1.bf16.msra.mxu0 %v465
        %482 = vmatprep.subr.bf16.mxu0 0
        %483 = vmatpush1.bf16.msra.mxu0 %v464
        %484 = vmatprep.subr.bf16.mxu0 0
        %485 = vmatpush1.bf16.msra.mxu0 %v463
        %486 = vmatprep.subr.bf16.mxu0 0
        %487 = vmatpush1.bf16.msra.mxu0 %v462
        %488 = vmatprep.subr.bf16.mxu0 0
        %489 = vmatpush1.bf16.msra.mxu0 %v461
        %490 = vmatprep.subr.bf16.mxu0 0
        %491 = vmatpush1.bf16.msra.mxu0 %v460
        %492 = vmatprep.subr.bf16.mxu0 0
        %493 = vmatpush2.bf16.msra.mxu0 0
        %494 = vmatprep.subr.bf16.mxu0 0
        %495 = vmatpush2.bf16.msra.mxu0 0
        %496 = vmatprep.subr.bf16.mxu0 0
        %497 = vmatpush2.bf16.msra.mxu0 0
        %498 = vmatprep.subr.bf16.mxu0 0
        %499 = vmatpush2.bf16.msra.mxu0 0
        %500 = vmatprep.subr.bf16.mxu0 0
        %501 = vmatpush2.bf16.msra.mxu0 0
        %502 = vmatprep.subr.bf16.mxu0 0
        %503 = vmatpush2.bf16.msra.mxu0 0
        %504 = vmatprep.subr.bf16.mxu0 0
        %505 = vmatpush2.bf16.msra.mxu0 0
        %506 = vmatprep.subr.bf16.mxu0 0
        %507 = vmatpush2.bf16.msra.mxu0 0
        %508 = vmatprep.mubr.bf16.mxu0 0
        %509 = vmatmul.mubr.bf16.gmra.mxu0 %v404
        %v510 = vpop.f32.mrf.mxu0
        %v511 = vadd.f32 %v426, %v510
        %v512 = vpop.f32.mrf.mxu0
        %v513 = vpop.f32.mrf.mxu0
        %v514 = vadd.f32 %v426, %v513
        %v515 = vpop.f32.mrf.mxu0
        %516 = vdwg.mxu0
        %v517 = vsub.f32 %v302, %v511
        %v518 = vsub.f32 %v303, %v514
        %v519 = vand.u32 2147483647, %v517
        %v520 = vand.u32 2147483647, %v518
        %v521 = vsel %vm394, %v519, 0.0
        %v522 = vsel %vm395, %v520, 0.0
        %v523 = vsel %vm340, %v521, 0.0
        %v524 = vsel %vm340, %v522, 0.0
        %v525 = vadd.f32 %v523, %v524
        %526 = vst.msk [vmem:[%s288] sm:$0xff] %vm340, %v525
        %s527 = sand.u32 %s186, 1
        %s528 = scalar_lea.sflag [#allocation3], %s527
        %s529 = sand.u32 %s186, 1
        %s530 = smul.addr %s529, 8
        %s531 = scalar_lea.vmem [#allocation2], %s530
        // Predicated region
        $region49: #{tpu_custom_call.1} parent=47 // pred_check
          %p532 = pneg %p196
        $region50: #{tpu_custom_call.1} parent=47 // pred_check_branch
          %534 = sbr.rel (%p532) target = $region52
        $region51: #{tpu_custom_call.1} parent=47 // pred_region
          %s536 = ssub.s32 128, 128
          %537 = vsyncadd %s528, %s536
          %s538 = smul.addr %s21, 128
          %s539 = scalar_lea.hbm %s7, %s538
          %s541 = sshll.u32 %s531, 4
          %s542 = int_to_ptr.vmem [resolvable:$true] %s541
          %544 = dma.vmem_to_hbm [thread:$0]  %s542, 128, %s539, %s528
        $region52: #{tpu_custom_call.1} parent=47 // pred_fallthru
          _
      $region48: #{tpu_custom_call.1} parent=5 // pred_fallthru
        _
      %p545 = scmp.le.s32.totalorder 2, %s16
      // Predicated region
      $region53: #{tpu_custom_call.1} parent=5 // pred_check
        %p546 = pneg %p545
      $region54: #{tpu_custom_call.1} parent=5 // pred_check_branch
        %548 = sbr.rel (%p546) target = $region56
      $region55: #{tpu_custom_call.1} parent=5 // pred_region
        %s549 = ssub.s32 %s16, 2
        // Predicated region
        $region57: #{tpu_custom_call.1} parent=55 // pred_check
          %p550 = pneg %p202
        $region58: #{tpu_custom_call.1} parent=55 // pred_check_branch
          %552 = sbr.rel (%p550) target = $region60
        $region59: #{tpu_custom_call.1} parent=55 // pred_region
          %s553 = sand.u32 %s187, 1
          %s554 = scalar_lea.sflag [#allocation3], %s553
          %s555 = sand.u32 %s187, 1
          %s556 = smul.addr %s555, 8
          %s557 = scalar_lea.vmem [#allocation2], %s556
          %558 = dma.done %s554, 128
        $region60: #{tpu_custom_call.1} parent=55 // pred_fallthru
          _
      $region56: #{tpu_custom_call.1} parent=5 // pred_fallthru
        _
    $region6: #{tpu_custom_call.1} parent=1 // loop_footer
      %s20 = sadd.s32 1, %s16
    $region7: #{tpu_custom_call.1} parent=1 // loop_footer_branch
      %15 = sbr.rel target = $region3
    $region8: #{tpu_custom_call.1} parent=1 // loop_exit
      _
    %559 = vsyncpa [#allocation3], 1
    %s560 = scalar_lea.sflag [#allocation3], 1
    %561 = vsyncpa %s560, 1

</llo_original>
